<compile_context>
chip_gen: v7x
topology: tpu7x:2x2x1
jax: 0.10.0
libtpu: 0.0.40
codegen_flags: <defaults>
</compile_context>

<pallas_src>
import functools

import jax
import jax.numpy as jnp
from jax.experimental import pallas as pl
from jax.experimental.pallas import tpu as pltpu


VMEM_SPEC = pl.BlockSpec(memory_space=pltpu.MemorySpace.VMEM)


# ----------------------------------------------------------------------------
# Pallas kernels
# ----------------------------------------------------------------------------
def _feature_transform_kernel(x_ref, w_ref, o_ref):
    # X @ W1, hoisted out of the fused tower (perf review item 1).
    o_ref[...] = jnp.dot(
        x_ref[...], w_ref[...],
        preferred_element_type=jnp.float32).astype(o_ref.dtype)


def _fused_graph_tower_kernel(a_ref, xw1_ref, b1_ref, w2_ref, b2_ref,
                              sel_ref, wp_ref, bp_ref, o_ref,
                              h1w2_ref, focus_ref, *, tm):
    """Fused 2-layer GCN + centric-node gather + projector.

    grid = (2 layers, N // tm row blocks), layer outer.

      layer 0, block i : h1        = relu(A[blk,:] @ XW1 + b1)
                         scratch[blk] = h1 @ W2      <- layer-1 weight matmul
                                                        folded in per block
      layer 1, block i : h2        = A[blk,:] @ scratch + b2
                         focus    += sel[:, blk] @ h2  <- distributed gather
      layer 1, last blk: out       = focus @ Wp + bp

    No serialized prologue/epilogue steps: the MXU streams A row blocks the
    whole time.

    NOTE: o_ref has a constant out index_map and is written only on the final
    grid step; correctness relies on the single writeback at grid end (keep
    this invariant if the out BlockSpec is ever changed).
    """
    layer = pl.program_id(0)
    i = pl.program_id(1)
    nb = pl.num_programs(1)
    row0 = pl.multiple_of(i * tm, tm)

    # ---- layer 0: aggregate + relu, then fold in the layer-1 weight matmul
    @pl.when(layer == 0)
    def _():
        h1 = jnp.dot(a_ref[...], xw1_ref[...],
                     preferred_element_type=jnp.float32)
        h1 = jnp.maximum(h1 + b1_ref[...], 0.0)
        h1w2 = jnp.dot(h1.astype(w2_ref.dtype), w2_ref[...],
                       preferred_element_type=jnp.float32)
        h1w2_ref[pl.ds(row0, tm), :] = h1w2.astype(h1w2_ref.dtype)

    # ---- layer 1: aggregate + bias, distributed centric-node gather
    @pl.when(jnp.logical_and(layer == 1, i == 0))
    def _():
        focus_ref[...] = jnp.zeros_like(focus_ref)

    @pl.when(layer == 1)
    def _():
        h2 = jnp.dot(a_ref[...], h1w2_ref[...],
                     preferred_element_type=jnp.float32) + b2_ref[...]
        # Each centric node is one-hot across the FULL node axis, so summing
        # per-block partial gathers (incl. exactly one b2 contribution per
        # batch row) is exact.
        focus_ref[...] += jnp.dot(sel_ref[...], h2.astype(sel_ref.dtype),
                                  preferred_element_type=jnp.float32)

    # ---- epilogue on the final block only: projector
    @pl.when(jnp.logical_and(layer == 1, i == nb - 1))
    def _():
        o_ref[...] = (
            jnp.dot(focus_ref[...].astype(wp_ref.dtype), wp_ref[...],
                    preferred_element_type=jnp.float32) + bp_ref[...])


def _text_mlp_kernel(x_ref, w1_ref, b1_ref, w2_ref, b2_ref, o_ref):
    # CLS-token rows only: gelu(X W1 + b1) W2 + b2
    h = jnp.dot(x_ref[...], w1_ref[...], preferred_element_type=jnp.float32)
    h = jax.nn.gelu(h + b1_ref[...])
    o_ref[...] = (
        jnp.dot(h.astype(w2_ref.dtype), w2_ref[...],
                preferred_element_type=jnp.float32) + b2_ref[...])


def _clip_loss_kernel(node_ref, text_ref, neigh_ref, o_ref):
    node = node_ref[...]                      # (B, D) f32
    text = text_ref[...]                      # (B, D) f32
    # Mean over the S sampled neighbours: plain VPU/XLU reduction over the
    # sublane-ish axis, no pooling matmul (perf review).
    neigh = jnp.mean(neigh_ref[...], axis=1)  # (B, S, D) -> (B, D)

    def l2norm(v):
        return v * jax.lax.rsqrt(
            jnp.sum(v * v, axis=1, keepdims=True) + 1e-12)

    node = l2norm(node)
    text = l2norm(text)
    neigh = l2norm(neigh)

    def contrastive_ce(a, b):
        # logits[i, j] = <a_i, b_j>; labels = arange(B)
        logits = jax.lax.dot_general(
            a, b, (((1,), (1,)), ((), ())),
            preferred_element_type=jnp.float32)        # (B, B)
        m = jnp.max(logits, axis=1, keepdims=True)
        lse = m[:, 0] + jnp.log(jnp.sum(jnp.exp(logits - m), axis=1))
        diag = jnp.sum(a * b, axis=1)                  # logits[i, i]
        return jnp.mean(lse - diag)

    l1 = contrastive_ce(node, text)
    l2 = contrastive_ce(node, neigh)
    l3 = contrastive_ce(text, neigh)

    # single lane-dense (1, 128) output; losses live in lanes 0, 1, 2
    lane = jax.lax.broadcasted_iota(jnp.int32, (1, 128), 1)
    o_ref[...] = jnp.where(
        lane == 0, l1, jnp.where(lane == 1, l2, jnp.where(lane == 2, l3, 0.0)))


# ----------------------------------------------------------------------------
# Wrappers (pallas_call glue)
# ----------------------------------------------------------------------------
def feature_transform(x_bf16, w1_bf16):
    # TODO(synk): tile over N rows for graphs whose (N, F) features exceed VMEM.
    n = x_bf16.shape[0]
    h = w1_bf16.shape[1]
    return pl.pallas_call(
        _feature_transform_kernel,
        out_shape=jax.ShapeDtypeStruct((n, h), jnp.bfloat16),
        in_specs=[VMEM_SPEC, VMEM_SPEC],
        out_specs=VMEM_SPEC,
    )(x_bf16, w1_bf16)


def fused_graph_tower(a_hat, xw1, b1, w2, b2, sel, wp, bp, *,
                      row_tile=None, vmem_limit_bytes=64 * 1024 * 1024):
    n, h = xw1.shape
    p = wp.shape[1]
    b = sel.shape[0]

    # Row-tile policy (perf review): collapse the row grid when A fits in one
    # block (then A is DMA'd once and reused for BOTH layers); otherwise
    # stream A in large row blocks (~512 on v5e/v6e's 128 MiB VMEM, ~256 on
    # v7x's 64 MiB) with vmem_limit_bytes raised accordingly.
    if row_tile is None or row_tile >= n:
        row_tile = n
    assert n % row_tile == 0, "num_nodes must be divisible by row_tile"
    nb = n // row_tile

    if row_tile == n:
        a_spec = pl.BlockSpec((n, n), lambda l, i: (0, 0))        # single DMA
        sel_spec = pl.BlockSpec((b, n), lambda l, i: (0, 0))
    else:
        a_spec = pl.BlockSpec((row_tile, n), lambda l, i: (i, 0))
        sel_spec = pl.BlockSpec((b, row_tile), lambda l, i: (0, i))

    # TODO(synk): constant-index operands (XW1, W2, biases, Wp) could use
    #             pipeline_mode=pl.Buffered(1) to drop their second VMEM
    #             buffer; left at defaults for jax-version compatibility.
    return pl.pallas_call(
        functools.partial(_fused_graph_tower_kernel, tm=row_tile),
        out_shape=jax.ShapeDtypeStruct((b, p), jnp.float32),
        grid_spec=pltpu.PrefetchScalarGridSpec(
            num_scalar_prefetch=0,
            grid=(2, nb),                                   # (layer, row blk)
            in_specs=[
                a_spec,                                          # A_hat
                pl.BlockSpec((n, h), lambda l, i: (0, 0)),       # X @ W1
                pl.BlockSpec((1, h), lambda l, i: (0, 0)),       # b1
                pl.BlockSpec((h, h), lambda l, i: (0, 0)),       # W2
                pl.BlockSpec((1, h), lambda l, i: (0, 0)),       # b2
                sel_spec,                                        # one-hot sel
                pl.BlockSpec((h, p), lambda l, i: (0, 0)),       # Wp
                pl.BlockSpec((1, p), lambda l, i: (0, 0)),       # bp
            ],
            out_specs=pl.BlockSpec((b, p), lambda l, i: (0, 0)),
            scratch_shapes=[
                pltpu.VMEM((n, h), jnp.bfloat16),   # H1 @ W2
                pltpu.VMEM((b, h), jnp.float32),    # focus accumulator
            ],
        ),
        compiler_params=pltpu.CompilerParams(
            dimension_semantics=("arbitrary", "arbitrary"),
            vmem_limit_bytes=vmem_limit_bytes),
    )(a_hat, xw1, b1, w2, b2, sel, wp, bp)


def text_encoder(token_ids, tok_embed, w1, b1, w2, b2):
    # Only the CLS token (position 0) feeds the output of this per-token
    # placeholder encoder, so slice BEFORE the MLP (seq_len x fewer FLOPs).
    cls_ids = token_ids[:, 0]                            # (T,)
    emb = tok_embed[cls_ids]                             # (T, H) bf16 gather glue
    return pl.pallas_call(
        _text_mlp_kernel,
        out_shape=jax.ShapeDtypeStruct((emb.shape[0], w2.shape[1]), jnp.float32),
        in_specs=[VMEM_SPEC] * 5,
        out_specs=VMEM_SPEC,
    )(emb, w1, b1, w2, b2)


def clip_losses(node_embed, text_embed, neigh_embed):
    out = pl.pallas_call(
        _clip_loss_kernel,
        out_shape=jax.ShapeDtypeStruct((1, 128), jnp.float32),
        in_specs=[VMEM_SPEC] * 3,
        out_specs=VMEM_SPEC,
    )(node_embed, text_embed, neigh_embed)
    return out[0, 0], out[0, 1], out[0, 2]


# ----------------------------------------------------------------------------
# Model (parameters + forward), mirroring TextGraphCLIP.forward
# ----------------------------------------------------------------------------
def init_params(key, gnn_input_dim, gnn_hidden_dim, projector_dim,
                text_hidden, text_ffn, vocab):
    ks = jax.random.split(key, 6)
    scale = 0.05
    bf16 = jnp.bfloat16
    # MXU weights are pre-cast to bf16 ONCE here (perf review: avoids
    # per-forward convert ops / HBM traffic); biases stay f32 since they are
    # added to f32 accumulators after the matmuls.
    return dict(
        gcn_w1=(scale * jax.random.normal(ks[0], (gnn_input_dim, gnn_hidden_dim))).astype(bf16),
        gcn_b1=jnp.zeros((1, gnn_hidden_dim), jnp.float32),
        gcn_w2=(scale * jax.random.normal(ks[1], (gnn_hidden_dim, gnn_hidden_dim))).astype(bf16),
        gcn_b2=jnp.zeros((1, gnn_hidden_dim), jnp.float32),
        proj_w=(scale * jax.random.normal(ks[2], (gnn_hidden_dim, projector_dim))).astype(bf16),
        proj_b=jnp.zeros((1, projector_dim), jnp.float32),
        tok_embed=(scale * jax.random.normal(ks[3], (vocab, text_hidden))).astype(bf16),
        txt_w1=(scale * jax.random.normal(ks[4], (text_hidden, text_ffn))).astype(bf16),
        txt_b1=jnp.zeros((1, text_ffn), jnp.float32),
        txt_w2=(scale * jax.random.normal(ks[5], (text_ffn, text_hidden))).astype(bf16),
        txt_b2=jnp.zeros((1, text_hidden), jnp.float32),
    )


def build_normalized_adjacency(edge_index, num_nodes):
    # Dense, symmetrically-normalized adjacency with self loops (GCN).
    src, dst = edge_index[0], edge_index[1]
    a = jnp.zeros((num_nodes, num_nodes), jnp.float32).at[dst, src].set(1.0)
    a = jnp.maximum(a, a.T)                                       # undirected
    a = jnp.maximum(a, jnp.eye(num_nodes, dtype=jnp.float32))     # self loops
    deg = jnp.sum(a, axis=1)
    d_inv_sqrt = jax.lax.rsqrt(deg)
    return a * d_inv_sqrt[:, None] * d_inv_sqrt[None, :]


def text_graph_clip_forward(params, graph_x, edge_index, centric_nodes,
                            node_tokens, neighbor_tokens, num_samples,
                            *, row_tile=None):
    num_nodes = graph_x.shape[0]
    bf16 = jnp.bfloat16

    # Graph glue (plain XLA): normalized adjacency + one-hot centric selector.
    a_hat = build_normalized_adjacency(edge_index, num_nodes).astype(bf16)
    sel = (centric_nodes[:, None] == jnp.arange(num_nodes)[None, :]).astype(bf16)

    # ---- graph tower: hoisted X@W1, then fused GCN x2 + gather + projector
    xw1 = feature_transform(graph_x.astype(bf16), params["gcn_w1"])
    node_embed = fused_graph_tower(
        a_hat, xw1, params["gcn_b1"], params["gcn_w2"], params["gcn_b2"],
        sel, params["proj_w"], params["proj_b"], row_tile=row_tile)  # (B, D)

    # ---- text tower: node texts + neighbor texts in one call ----
    # TODO(synk): neighbor_tokens assumed batch-major [b0s0..b0s{S-1}, b1s0..].
    all_tokens = jnp.concatenate([node_tokens, neighbor_tokens], axis=0)
    all_text_embed = text_encoder(
        all_tokens, params["tok_embed"],
        params["txt_w1"], params["txt_b1"],
        params["txt_w2"], params["txt_b2"])                        # (B+B*S, D)

    b = node_embed.shape[0]
    text_embed = all_text_embed[:b]                                # (B, D)
    neigh_embed = all_text_embed[b:].reshape(b, num_samples, -1)   # (B, S, D)

    # mean-pool + L2-normalize + 3 contrastive CE losses fused in one kernel
    return clip_losses(node_embed, text_embed, neigh_embed)


# ----------------------------------------------------------------------------
# Example
# ----------------------------------------------------------------------------
if __name__ == "__main__":
    # Small, deterministic, lane/sublane-friendly config.
    GNN_INPUT_DIM = 128
    GNN_HIDDEN_DIM = 128
    PROJECTOR_DIM = 128          # == text hidden dim (required for CLIP logits)
    TEXT_HIDDEN = 128
    TEXT_FFN = 256
    VOCAB = 128
    NUM_NODES = 64
    NUM_EDGES = 128
    BATCH = 8                    # sublane-aligned batch
    NUM_SAMPLES = 4
    SEQ_LEN = 8
    ROW_TILE = None              # toy N=64: collapse the row grid (grid=(2,1));
                                 # production: ~512 on v5e/v6e, ~256 on v7x.

    root = jax.random.PRNGKey(0)
    k_param, k_x, k_src, k_dst, k_cent, k_tok, k_ntok = jax.random.split(root, 7)

    params = init_params(k_param, GNN_INPUT_DIM, GNN_HIDDEN_DIM, PROJECTOR_DIM,
                         TEXT_HIDDEN, TEXT_FFN, VOCAB)

    graph_x = jax.random.normal(k_x, (NUM_NODES, GNN_INPUT_DIM), jnp.float32)
    edge_index = jnp.stack([
        jax.random.randint(k_src, (NUM_EDGES,), 0, NUM_NODES),
        jax.random.randint(k_dst, (NUM_EDGES,), 0, NUM_NODES),
    ]).astype(jnp.int32)                                          # (2, E)
    centric_nodes = jax.random.randint(k_cent, (BATCH,), 0, NUM_NODES).astype(jnp.int32)
    node_tokens = jax.random.randint(k_tok, (BATCH, SEQ_LEN), 0, VOCAB).astype(jnp.int32)
    neighbor_tokens = jax.random.randint(
        k_ntok, (BATCH * NUM_SAMPLES, SEQ_LEN), 0, VOCAB).astype(jnp.int32)

    losses = text_graph_clip_forward(
        params, graph_x, edge_index, centric_nodes,
        node_tokens, neighbor_tokens, NUM_SAMPLES, row_tile=ROW_TILE)
    losses = jax.block_until_ready(losses)

    node2text_loss, node2neightext_loss, text2neightext_loss = losses
    assert all(jnp.isfinite(l) for l in losses)
    print("KERNEL_OK")
</pallas_src>

<mosaic_0001>
module attributes {stable_mosaic.version = 11 : i64} {
  func.func @_feature_transform_kernel(%arg0: memref<64x128xbf16, #tpu.memory_space<vmem>>, %arg1: memref<128x128xbf16, #tpu.memory_space<vmem>>, %arg2: memref<64x128xbf16, #tpu.memory_space<vmem>>) attributes {dimension_semantics = [], scalar_prefetch = 0 : i64, scratch_operands = 0 : i64, tpu.core_type = #tpu.core_type<tc>} {
    %c0 = arith.constant 0 : index
    %c0_0 = arith.constant 0 : index
    %0 = vector.load %arg0[%c0, %c0_0] : memref<64x128xbf16, #tpu.memory_space<vmem>>, vector<64x128xbf16>
    %c0_1 = arith.constant 0 : index
    %c0_2 = arith.constant 0 : index
    %1 = vector.load %arg1[%c0_1, %c0_2] : memref<128x128xbf16, #tpu.memory_space<vmem>>, vector<128x128xbf16>
    %cst = arith.constant dense<0.000000e+00> : vector<64x128xf32>
    %2 = tpu.matmul %0, %1, %cst {dimension_numbers = #tpu.dot_dimension_numbers<[1], [0], [0], [1], [0, 0, 1, 1], [], []>} : vector<64x128xbf16>, vector<128x128xbf16>, vector<64x128xf32> -> vector<64x128xf32>
    %3 = arith.truncf %2 : vector<64x128xf32> to vector<64x128xbf16>
    %c0_3 = arith.constant 0 : index
    %c0_4 = arith.constant 0 : index
    %4 = vector.load %arg2[%c0_3, %c0_4] : memref<64x128xbf16, #tpu.memory_space<vmem>>, vector<64x128xbf16>
    tpu.vector_store %arg2[%c0_3, %c0_4], %3 {strides = array<i32>} : memref<64x128xbf16, #tpu.memory_space<vmem>>, vector<64x128xbf16>,
    return
  }
}

</mosaic_0001>

<llo_original>
// kernel: tpu_custom_call.1
$region0: #{tpu_custom_call.1}
  #allocation0 [shape = 'u32[]', space=smem, size = 0x4, offset = 0x4, fixed_abs, tag = 'smem constant byte address 0x4 - core index']
  #allocation1 [shape = 'u32[144,128]{1,0:T(1,128)}', space=vmem, size = 0x12000, scoped, tag = 'internal scratch']
  %s0 = inlined_call_operand.hbm [shape: bf16[64,128], index: 0, kind: input, shape index: {}]
  %s1 = inlined_call_operand.hbm [shape: bf16[128,128], index: 1, kind: input, shape index: {}]
  %s2 = inlined_call_operand.hbm [shape: bf16[64,128], index: 2, kind: output, shape index: {}]
  %s3 = sld [smem:[#allocation0]]
  $region26: #{tpu_custom_call.1} parent=0
    _
  %s5 = ssub.s32 1, %s3
  %s6 = scalar_select 0, %s5, %s3
  $region1: #{tpu_custom_call.1} parent=0
    #allocation2 [shape = 'u8[16384]{0}', space=vmem, size = 0x4000, scoped, tag = 'input window, operand 0, single buffered']
    #allocation3 [shape = 's32[1]{0}', space=sflag, size = 0x4, scoped, tag = 'scoped memory for tpu_custom_call.1']
    #allocation4 [shape = 's32[1]{0}', space=sflag, size = 0x4, scoped, tag = 'scoped memory for tpu_custom_call.1']
    #allocation5 [shape = 'u8[32768]{0}', space=vmem, size = 0x8000, scoped, tag = 'input window, operand 1, single buffered']
    #allocation6 [shape = 's32[1]{0}', space=sflag, size = 0x4, scoped, tag = 'scoped memory for tpu_custom_call.1']
    #allocation7 [shape = 'u8[16384]{0}', space=vmem, size = 0x4000, scoped, tag = 'output window, operand 0, single buffered']
    %7 = vsyncpa [#allocation3], 0
    %8 = vsyncpa [#allocation6], 0
    %9 = vsyncpa [#allocation4], 0
    // Predicated region
    $region2: #{tpu_custom_call.1} parent=1 // pred_check
      _
    $region3: #{tpu_custom_call.1} parent=1 // pred_check_branch
      %11 = sbr.rel (0) target = $region5
    $region4: #{tpu_custom_call.1} parent=1 // pred_region
      %s13 = ssub.s32 512, 512
      %14 = vsyncadd [#allocation3], %s13
      %s15 = sshll.u32 [#allocation2], 4
      %s16 = int_to_ptr.vmem [resolvable:$true] %s15
      %21 = dma.hbm_to_vmem [thread:$0]  %s0, 512, %s16, [#allocation3], 64, 64, 4
    $region5: #{tpu_custom_call.1} parent=1 // pred_fallthru
      _
    // Predicated region
    $region6: #{tpu_custom_call.1} parent=1 // pred_check
      _
    $region7: #{tpu_custom_call.1} parent=1 // pred_check_branch
      %23 = sbr.rel (0) target = $region9
    $region8: #{tpu_custom_call.1} parent=1 // pred_region
      %s25 = ssub.s32 1024, 1024
      %26 = vsyncadd [#allocation6], %s25
      %s27 = sshll.u32 [#allocation5], 4
      %s28 = int_to_ptr.vmem [resolvable:$true] %s27
      %33 = dma.hbm_to_vmem [thread:$0]  %s1, 1024, %s28, [#allocation6], 64, 64, 4
    $region9: #{tpu_custom_call.1} parent=1 // pred_fallthru
      _
    // Predicated region
    $region10: #{tpu_custom_call.1} parent=1 // pred_check
      _
    $region11: #{tpu_custom_call.1} parent=1 // pred_check_branch
      %35 = sbr.rel (0) target = $region13
    $region12: #{tpu_custom_call.1} parent=1 // pred_region
      %36 = dma.done [#allocation3], 512
    $region13: #{tpu_custom_call.1} parent=1 // pred_fallthru
      _
    // Predicated region
    $region14: #{tpu_custom_call.1} parent=1 // pred_check
      _
    $region15: #{tpu_custom_call.1} parent=1 // pred_check_branch
      %38 = sbr.rel (0) target = $region17
    $region16: #{tpu_custom_call.1} parent=1 // pred_region
      %39 = dma.done [#allocation6], 1024
    $region17: #{tpu_custom_call.1} parent=1 // pred_fallthru
      _
    %v41 = vld [vmem:[#allocation2] sm:$0xf]
    %v42 = vld [vmem:[#allocation2 + $0x4] sm:$0xf]
    %v43 = vld [vmem:[#allocation2 + $0x8] sm:$0xf]
    %v44 = vld [vmem:[#allocation2 + $0xc] sm:$0xf]
    %v45 = vld [vmem:[#allocation2 + $0x10] sm:$0xf]
    %v46 = vld [vmem:[#allocation2 + $0x14] sm:$0xf]
    %v47 = vld [vmem:[#allocation2 + $0x18] sm:$0xf]
    %v48 = vld [vmem:[#allocation2 + $0x1c] sm:$0xf]
    %v49 = vld [vmem:[#allocation5] sm:$0xf]
    %v50 = vld [vmem:[#allocation5 + $0x4] sm:$0xf]
    %v51 = vld [vmem:[#allocation5 + $0x8] sm:$0xf]
    %v52 = vld [vmem:[#allocation5 + $0xc] sm:$0xf]
    %v53 = vld [vmem:[#allocation5 + $0x10] sm:$0xf]
    %v54 = vld [vmem:[#allocation5 + $0x14] sm:$0xf]
    %v55 = vld [vmem:[#allocation5 + $0x18] sm:$0xf]
    %v56 = vld [vmem:[#allocation5 + $0x1c] sm:$0xf]
    %v57 = vld [vmem:[#allocation5 + $0x20] sm:$0xf]
    %v58 = vld [vmem:[#allocation5 + $0x24] sm:$0xf]
    %v59 = vld [vmem:[#allocation5 + $0x28] sm:$0xf]
    %v60 = vld [vmem:[#allocation5 + $0x2c] sm:$0xf]
    %v61 = vld [vmem:[#allocation5 + $0x30] sm:$0xf]
    %v62 = vld [vmem:[#allocation5 + $0x34] sm:$0xf]
    %v63 = vld [vmem:[#allocation5 + $0x38] sm:$0xf]
    %v64 = vld [vmem:[#allocation5 + $0x3c] sm:$0xf]
    %v73 = vunpack.c.l.b16 %v41
    %v74 = vunpack.c.l.b16 %v42
    %v75 = vunpack.c.l.b16 %v43
    %v76 = vunpack.c.l.b16 %v44
    %v77 = vunpack.c.l.b16 %v45
    %v78 = vunpack.c.l.b16 %v46
    %v79 = vunpack.c.l.b16 %v47
    %v80 = vunpack.c.l.b16 %v48
    %v81 = vpack.c.b16 %v74, %v73
    %v82 = vpack.c.b16 %v76, %v75
    %v83 = vpack.c.b16 %v78, %v77
    %v84 = vpack.c.b16 %v80, %v79
    %v105 = vunpack.c.l.b16 %v49
    %v106 = vunpack.c.l.b16 %v50
    %v107 = vunpack.c.l.b16 %v51
    %v108 = vunpack.c.l.b16 %v52
    %v109 = vunpack.c.l.b16 %v53
    %v110 = vunpack.c.l.b16 %v54
    %v111 = vunpack.c.l.b16 %v55
    %v112 = vunpack.c.l.b16 %v56
    %v113 = vunpack.c.l.b16 %v57
    %v114 = vunpack.c.l.b16 %v58
    %v115 = vunpack.c.l.b16 %v59
    %v116 = vunpack.c.l.b16 %v60
    %v117 = vunpack.c.l.b16 %v61
    %v118 = vunpack.c.l.b16 %v62
    %v119 = vunpack.c.l.b16 %v63
    %v120 = vunpack.c.l.b16 %v64
    %v121 = vpack.c.b16 %v106, %v105
    %v122 = vpack.c.b16 %v108, %v107
    %v123 = vpack.c.b16 %v110, %v109
    %v124 = vpack.c.b16 %v112, %v111
    %v125 = vpack.c.b16 %v114, %v113
    %v126 = vpack.c.b16 %v116, %v115
    %v127 = vpack.c.b16 %v118, %v117
    %v128 = vpack.c.b16 %v120, %v119
    %137 = vmatprep.subr.bf16.mxu0 0
    %138 = vmatpush1.bf16.msra.mxu0 %v121
    %139 = vmatprep.subr.bf16.mxu0 0
    %140 = vmatpush1.bf16.msra.mxu0 %v122
    %141 = vmatprep.subr.bf16.mxu0 0
    %142 = vmatpush1.bf16.msra.mxu0 %v123
    %143 = vmatprep.subr.bf16.mxu0 0
    %144 = vmatpush1.bf16.msra.mxu0 %v124
    %145 = vmatprep.subr.bf16.mxu0 0
    %146 = vmatpush1.bf16.msra.mxu0 %v125
    %147 = vmatprep.subr.bf16.mxu0 0
    %148 = vmatpush1.bf16.msra.mxu0 %v126
    %149 = vmatprep.subr.bf16.mxu0 0
    %150 = vmatpush1.bf16.msra.mxu0 %v127
    %151 = vmatprep.subr.bf16.mxu0 0
    %152 = vmatpush1.bf16.msra.mxu0 %v128
    %153 = vmatprep.subr.bf16.mxu0 0
    %154 = vmatpush1.bf16.msra.mxu0 0
    %155 = vmatprep.subr.bf16.mxu0 0
    %156 = vmatpush1.bf16.msra.mxu0 0
    %157 = vmatprep.subr.bf16.mxu0 0
    %158 = vmatpush1.bf16.msra.mxu0 0
    %159 = vmatprep.subr.bf16.mxu0 0
    %160 = vmatpush1.bf16.msra.mxu0 0
    %161 = vmatprep.subr.bf16.mxu0 0
    %162 = vmatpush1.bf16.msra.mxu0 0
    %163 = vmatprep.subr.bf16.mxu0 0
    %164 = vmatpush1.bf16.msra.mxu0 0
    %165 = vmatprep.subr.bf16.mxu0 0
    %166 = vmatpush1.bf16.msra.mxu0 0
    %167 = vmatprep.subr.bf16.mxu0 0
    %168 = vmatpush1.bf16.msra.mxu0 0
    %169 = vmatprep.mubr.bf16.mxu0 0
    %170 = vmatmul.mubr.bf16.gmra.mrb[0].mxu0 %v81
    %v171 = vpop.f32.mrb[0].mxu0
    %v172 = vadd.f32 0.0, %v171
    %v173 = vpop.f32.mrb[0].mxu0
    %v174 = vpop.f32.mrb[0].mxu0
    %v175 = vadd.f32 0.0, %v174
    %v176 = vpop.f32.mrb[0].mxu0
    %177 = vmatprep.mubr.bf16.mxu0 0
    %178 = vmatmul.mubr.bf16.gmra.mrb[0].mxu0 %v82
    %v179 = vpop.f32.mrb[0].mxu0
    %v180 = vadd.f32 0.0, %v179
    %v181 = vpop.f32.mrb[0].mxu0
    %v182 = vpop.f32.mrb[0].mxu0
    %v183 = vadd.f32 0.0, %v182
    %v184 = vpop.f32.mrb[0].mxu0
    %185 = vmatprep.mubr.bf16.mxu0 0
    %186 = vmatmul.mubr.bf16.gmra.mrb[0].mxu0 %v83
    %v187 = vpop.f32.mrb[0].mxu0
    %v188 = vadd.f32 0.0, %v187
    %v189 = vpop.f32.mrb[0].mxu0
    %v190 = vpop.f32.mrb[0].mxu0
    %v191 = vadd.f32 0.0, %v190
    %v192 = vpop.f32.mrb[0].mxu0
    %193 = vmatprep.mubr.bf16.mxu0 0
    %194 = vmatmul.mubr.bf16.gmra.mrb[0].mxu0 %v84
    %v195 = vpop.f32.mrb[0].mxu0
    %v196 = vadd.f32 0.0, %v195
    %v197 = vpop.f32.mrb[0].mxu0
    %v198 = vpop.f32.mrb[0].mxu0
    %v199 = vadd.f32 0.0, %v198
    %v200 = vpop.f32.mrb[0].mxu0
    %201 = vdwg.mxu0
    %v202 = vpack.c.bf16 %v175, %v172
    %v203 = vpack.c.bf16 %v183, %v180
    %v204 = vpack.c.bf16 %v191, %v188
    %v205 = vpack.c.bf16 %v199, %v196
    %v210 = vunpack.c.l.b16 %v202
    %v211 = vunpack.c.h.b16 %v202
    %v212 = vunpack.c.l.b16 %v203
    %v213 = vunpack.c.h.b16 %v203
    %v214 = vunpack.c.l.b16 %v204
    %v215 = vunpack.c.h.b16 %v204
    %v216 = vunpack.c.l.b16 %v205
    %v217 = vunpack.c.h.b16 %v205
    %v218 = vpack.c.b16 %v210, %v210
    %v219 = vpack.c.b16 %v211, %v211
    %v220 = vpack.c.b16 %v212, %v212
    %v221 = vpack.c.b16 %v213, %v213
    %v222 = vpack.c.b16 %v214, %v214
    %v223 = vpack.c.b16 %v215, %v215
    %v224 = vpack.c.b16 %v216, %v216
    %v225 = vpack.c.b16 %v217, %v217
    %234 = vst [vmem:[#allocation7] sm:$0xf] %v218
    %235 = vst [vmem:[#allocation7 + $0x4] sm:$0xf] %v219
    %236 = vst [vmem:[#allocation7 + $0x8] sm:$0xf] %v220
    %237 = vst [vmem:[#allocation7 + $0xc] sm:$0xf] %v221
    %238 = vst [vmem:[#allocation7 + $0x10] sm:$0xf] %v222
    %239 = vst [vmem:[#allocation7 + $0x14] sm:$0xf] %v223
    %240 = vst [vmem:[#allocation7 + $0x18] sm:$0xf] %v224
    %241 = vst [vmem:[#allocation7 + $0x1c] sm:$0xf] %v225
    // Predicated region
    $region18: #{tpu_custom_call.1} parent=1 // pred_check
      _
    $region19: #{tpu_custom_call.1} parent=1 // pred_check_branch
      %243 = sbr.rel (0) target = $region21
    $region20: #{tpu_custom_call.1} parent=1 // pred_region
      %s245 = ssub.s32 512, 512
      %246 = vsyncadd [#allocation4], %s245
      %s247 = sshll.u32 [#allocation7], 4
      %s248 = int_to_ptr.vmem [resolvable:$true] %s247
      %253 = dma.vmem_to_hbm [thread:$0]  %s248, 512, %s2, [#allocation4], 64, 64, 4
    $region21: #{tpu_custom_call.1} parent=1 // pred_fallthru
      _
    // Predicated region
    $region22: #{tpu_custom_call.1} parent=1 // pred_check
      _
    $region23: #{tpu_custom_call.1} parent=1 // pred_check_branch
      %255 = sbr.rel (0) target = $region25
    $region24: #{tpu_custom_call.1} parent=1 // pred_region
      %256 = dma.done [#allocation4], 512
    $region25: #{tpu_custom_call.1} parent=1 // pred_fallthru
      _
    %257 = vsyncpa [#allocation3], 1
    %258 = vsyncpa [#allocation6], 1
    %259 = vsyncpa [#allocation4], 1

</llo_original>
